<compile_context>
chip_gen: v6e
topology: v6e:2x2x1
jax: 0.10.0
libtpu: 0.0.40
codegen_flags: <defaults>
</compile_context>

<pallas_src>
import jax
import jax.numpy as jnp
from jax import lax
from jax.experimental import pallas as pl
from jax.experimental.pallas import tpu as pltpu


# ----------------------------------------------------------------------------
# per-axis align_corners=True lerp coordinates / interpolation matrices
# ----------------------------------------------------------------------------
def _axis_lerp(out_size: int, in_size: int):
    """lo/hi indices (int32) and fractional weights (f32) for one axis."""
    if out_size == 1:
        coord = jnp.zeros((1,), jnp.float32)
    else:
        coord = (jnp.arange(out_size, dtype=jnp.float32)
                 * (in_size - 1) / (out_size - 1))
    lo = jnp.clip(jnp.floor(coord).astype(jnp.int32), 0, in_size - 1)
    hi = jnp.minimum(lo + 1, in_size - 1)
    frac = coord - lo.astype(jnp.float32)
    return lo, hi, frac


def _interp_matrix(out_size: int, in_size: int) -> jnp.ndarray:
    """Dense (out_size, in_size) linear-interpolation matrix."""
    lo, hi, frac = _axis_lerp(out_size, in_size)
    rows = jnp.arange(out_size)
    m = jnp.zeros((out_size, in_size), jnp.float32)
    m = m.at[rows, lo].add(1.0 - frac)
    m = m.at[rows, hi].add(frac)
    return m


# ----------------------------------------------------------------------------
# fused trilinear-upsample kernel (one (n,c) channel per grid step)
# ----------------------------------------------------------------------------
def _fused_upsample_kernel(d_lo_ref, d_hi_ref, d_f_ref,   # SMEM lerp tables
                           ah_ref, awt_ref,               # resident matrices
                           x_ref,                         # (Di, Hi, Wi)
                           o_ref,                         # (Do, Ho, Wo)
                           y_ref):                        # VMEM scratch (Di, Ho, Wo)
    d_in = x_ref.shape[0]
    d_out = o_ref.shape[0]

    a_h = ah_ref[...]          # (Ho, Hi)  — hoisted out of the loops
    a_w_t = awt_ref[...]       # (Wi, Wo)

    # ---- H and W interpolation of every input D-slice (MXU, f32 accum) ----
    def hw_body(di, carry):
        plane = x_ref[di].astype(jnp.float32)                       # (Hi, Wi)
        t = jnp.dot(a_h, plane, preferred_element_type=jnp.float32)  # (Ho, Wi)
        y_ref[di] = jnp.dot(t, a_w_t,
                            preferred_element_type=jnp.float32)      # (Ho, Wo)
        return carry

    lax.fori_loop(0, d_in, hw_body, 0)

    # ---- D interpolation: VPU lerp of two VMEM-resident planes ----
    def d_body(do, carry):
        lo = d_lo_ref[do]
        hi = d_hi_ref[do]
        f = d_f_ref[do]
        plane = (1.0 - f) * y_ref[lo] + f * y_ref[hi]                 # (Ho, Wo)
        o_ref[do] = plane.astype(o_ref.dtype)
        return carry

    lax.fori_loop(0, d_out, d_body, 0)


def _padded_bytes(shape, itemsize):
    """VMEM footprint of a tile including (8, 128) sublane/lane padding."""
    *lead, s, l = shape
    total = itemsize * (-(-s // 8) * 8) * (-(-l // 128) * 128)
    for d in lead:
        total *= d
    return total


def upsample_trilinear(x, size=None, scale_factor=None, align_corners=True):
    """Equivalent of Upsample(size, scale_factor, 'trilinear', True)(x),
    x in NCDHW layout."""
    assert align_corners, "only align_corners=True is implemented"
    n, c, d_in, h_in, w_in = x.shape
    if size is not None:
        d_out, h_out, w_out = (int(s) for s in size)
    else:
        if isinstance(scale_factor, (int, float)):
            scale_factor = (scale_factor,) * 3
        d_out = int(d_in * scale_factor[0])
        h_out = int(h_in * scale_factor[1])
        w_out = int(w_in * scale_factor[2])

    nc = n * c
    x2 = x.reshape(nc, d_in, h_in, w_in)            # contiguous, free reshape
    out_dtype = x.dtype
    out_itemsize = jnp.dtype(out_dtype).itemsize

    # tiny interpolation operands (resident across the whole grid)
    a_h = _interp_matrix(h_out, h_in)               # (Ho, Hi)
    a_w_t = _interp_matrix(w_out, w_in).T           # (Wi, Wo)
    d_lo, d_hi, d_f = _axis_lerp(d_out, d_in)       # int32/int32/f32, len Do

    # scheduler hint
    flops = nc * (d_in * 2 * h_out * (h_in * w_in + w_in * w_out)
                  + 3 * d_out * h_out * w_out)
    bytes_accessed = (x2.size * x2.dtype.itemsize
                      + nc * d_out * h_out * w_out * out_itemsize
                      + (a_h.size + a_w_t.size) * 4 + 3 * d_out * 4)
    cost = pl.CostEstimate(flops=int(flops), transcendentals=0,
                           bytes_accessed=int(bytes_accessed))

    # VMEM budget (double-buffered in/out blocks + scratch), with tile padding
    need = (2 * _padded_bytes((d_in, h_in, w_in), x2.dtype.itemsize)
            + _padded_bytes((d_in, h_out, w_out), 4)
            + 2 * _padded_bytes((d_out, h_out, w_out), out_itemsize)
            + 2 * _padded_bytes(a_h.shape, 4)
            + 2 * _padded_bytes(a_w_t.shape, 4)
            + (1 << 20))
    cp_kwargs = dict(dimension_semantics=("parallel",))
    if need > (32 << 20):
        # TODO(synk): beyond ~56 MiB per step, split the output-D axis into an
        # extra "arbitrary" grid dimension instead of raising the limit.
        cp_kwargs["vmem_limit_bytes"] = int(min(need, 56 << 20))

    out = pl.pallas_call(
        _fused_upsample_kernel,
        out_shape=jax.ShapeDtypeStruct((nc, d_out, h_out, w_out), out_dtype),
        grid=(nc,),
        in_specs=[
            pl.BlockSpec(memory_space=pltpu.MemorySpace.SMEM),   # d_lo
            pl.BlockSpec(memory_space=pltpu.MemorySpace.SMEM),   # d_hi
            pl.BlockSpec(memory_space=pltpu.MemorySpace.SMEM),   # d_f
            pl.BlockSpec((h_out, h_in), lambda i: (0, 0)),       # A_h (resident)
            pl.BlockSpec((w_in, w_out), lambda i: (0, 0)),       # A_w^T (resident)
            pl.BlockSpec((None, d_in, h_in, w_in),
                         lambda i: (i, 0, 0, 0)),                # x channel
        ],
        out_specs=pl.BlockSpec((None, d_out, h_out, w_out),
                               lambda i: (i, 0, 0, 0)),
        scratch_shapes=[pltpu.VMEM((d_in, h_out, w_out), jnp.float32)],
        compiler_params=pltpu.CompilerParams(**cp_kwargs),
        cost_estimate=cost,
    )(d_lo, d_hi, d_f, a_h, a_w_t, x2)

    return out.reshape(n, c, d_out, h_out, w_out)


# ----------------------------------------------------------------------------
# pure-JAX reference (same align_corners=True semantics as F.interpolate)
# ----------------------------------------------------------------------------
def _ref_trilinear_align_corners(x, out_size):
    n, c, d_in, h_in, w_in = x.shape
    d_out, h_out, w_out = out_size
    d0, d1, wd = _axis_lerp(d_out, d_in)
    h0, h1, wh = _axis_lerp(h_out, h_in)
    w0, w1, ww = _axis_lerp(w_out, w_in)
    xf = x.astype(jnp.float32)

    def gather(di_, hi_, wi_):
        return xf[:, :, di_][:, :, :, hi_][:, :, :, :, wi_]

    wd = wd[:, None, None]
    wh = wh[None, :, None]
    ww = ww[None, None, :]
    return ((1 - wd) * (1 - wh) * (1 - ww) * gather(d0, h0, w0)
            + (1 - wd) * (1 - wh) * ww * gather(d0, h0, w1)
            + (1 - wd) * wh * (1 - ww) * gather(d0, h1, w0)
            + (1 - wd) * wh * ww * gather(d0, h1, w1)
            + wd * (1 - wh) * (1 - ww) * gather(d1, h0, w0)
            + wd * (1 - wh) * ww * gather(d1, h0, w1)
            + wd * wh * (1 - ww) * gather(d1, h1, w0)
            + wd * wh * ww * gather(d1, h1, w1))


if __name__ == "__main__":
    root = jax.random.PRNGKey(0)
    k1, k2, k3, k4 = jax.random.split(root, 4)

    # ---- test 1: f32, scale_factor=2 (the configuration GALANet uses) ----
    x = jax.random.normal(k1, (2, 3, 4, 5, 6), dtype=jnp.float32)
    out = jax.block_until_ready(upsample_trilinear(x, scale_factor=2))
    assert out.shape == (2, 3, 8, 10, 12), out.shape
    ref = _ref_trilinear_align_corners(x, (8, 10, 12))
    assert jnp.allclose(out, ref, atol=1e-5, rtol=1e-5), "mismatch (test 1)"

    # ---- test 2: explicit non-uniform `size` with awkward ratios ----
    x = jax.random.normal(k2, (1, 2, 3, 7, 9), dtype=jnp.float32)
    out = jax.block_until_ready(upsample_trilinear(x, size=(5, 13, 16)))
    assert out.shape == (1, 2, 5, 13, 16), out.shape
    ref = _ref_trilinear_align_corners(x, (5, 13, 16))
    assert jnp.allclose(out, ref, atol=1e-5, rtol=1e-5), "mismatch (test 2)"

    # ---- test 3: bf16 input/output (cast happens inside the kernel) ----
    x = jax.random.normal(k3, (1, 4, 4, 6, 8), dtype=jnp.bfloat16)
    out = jax.block_until_ready(upsample_trilinear(x, scale_factor=2))
    assert out.shape == (1, 4, 8, 12, 16), out.shape
    assert out.dtype == jnp.bfloat16
    ref = _ref_trilinear_align_corners(x, (8, 12, 16))
    assert jnp.allclose(out.astype(jnp.float32), ref, atol=1e-2, rtol=1e-2), \
        "mismatch (test 3)"

    # ---- test 4: degenerate depth axis (d_in == 1) ----
    x = jax.random.normal(k4, (1, 1, 1, 4, 5), dtype=jnp.float32)
    out = jax.block_until_ready(upsample_trilinear(x, scale_factor=2))
    assert out.shape == (1, 1, 2, 8, 10), out.shape
    ref = _ref_trilinear_align_corners(x, (2, 8, 10))
    assert jnp.allclose(out, ref, atol=1e-5, rtol=1e-5), "mismatch (test 4)"

    print("KERNEL_OK")
</pallas_src>

<mosaic_0001>
module attributes {stable_mosaic.version = 11 : i64} {
  func.func @_fused_upsample_kernel(%arg0: i32, %arg1: memref<8xi32, #tpu.memory_space<smem>>, %arg2: memref<8xi32, #tpu.memory_space<smem>>, %arg3: memref<8xf32, #tpu.memory_space<smem>>, %arg4: memref<10x5xf32, #tpu.memory_space<vmem>>, %arg5: memref<6x12xf32, #tpu.memory_space<vmem>>, %arg6: memref<1x4x5x6xf32, #tpu.memory_space<vmem>>, %arg7: memref<1x8x10x12xf32, #tpu.memory_space<vmem>>, %arg8: memref<4x10x12xf32, #tpu.memory_space<vmem>>) attributes {dimension_semantics = [#tpu.dimension_semantics<parallel>], iteration_bounds = array<i64: 6>, scalar_prefetch = 0 : i64, scratch_operands = 1 : i64, tpu.core_type = #tpu.core_type<tc>, window_params = [{transform_indices = @transform_0, window_bounds = array<i64: 8>}, {transform_indices = @transform_1, window_bounds = array<i64: 8>}, {transform_indices = @transform_2, window_bounds = array<i64: 8>}, {pipeline_mode = #tpu.pipeline_mode<synchronous>, transform_indices = @transform_3, window_bounds = array<i64: 10, 5>}, {pipeline_mode = #tpu.pipeline_mode<synchronous>, transform_indices = @transform_4, window_bounds = array<i64: 6, 12>}, {transform_indices = @transform_5, window_bounds = array<i64: 1, 4, 5, 6>}, {transform_indices = @transform_6, window_bounds = array<i64: 1, 8, 10, 12>}]} {
    %c0 = arith.constant 0 : index
    %c0_0 = arith.constant 0 : index
    %0 = vector.load %arg4[%c0, %c0_0] : memref<10x5xf32, #tpu.memory_space<vmem>>, vector<10x5xf32>
    %c0_1 = arith.constant 0 : index
    %c0_2 = arith.constant 0 : index
    %1 = vector.load %arg5[%c0_1, %c0_2] : memref<6x12xf32, #tpu.memory_space<vmem>>, vector<6x12xf32>
    %c0_i32 = arith.constant 0 : i32
    %c4_i32 = arith.constant 4 : i32
    %2 = arith.addi %c0_i32, %c4_i32 : i32
    %c1_i32 = arith.constant 1 : i32
    scf.for %arg9 = %c0_i32 to %2 step %c1_i32  : i32 {
      %c0_7 = arith.constant 0 : index
      %4 = arith.index_cast %arg9 : i32 to index
      %c0_8 = arith.constant 0 : index
      %c0_9 = arith.constant 0 : index
      %5 = vector.load %arg6[%c0_7, %4, %c0_8, %c0_9] : memref<1x4x5x6xf32, #tpu.memory_space<vmem>>, vector<1x1x5x6xf32>
      %6 = vector.shape_cast %5 : vector<1x1x5x6xf32> to vector<5x6xf32>
      %cst = arith.constant dense<0.000000e+00> : vector<10x6xf32>
      %7 = tpu.matmul %0, %6, %cst {dimension_numbers = #tpu.dot_dimension_numbers<[1], [0], [0], [1], [0, 0, 1, 1], [], []>} : vector<10x5xf32>, vector<5x6xf32>, vector<10x6xf32> -> vector<10x6xf32>
      %cst_10 = arith.constant dense<0.000000e+00> : vector<10x12xf32>
      %8 = tpu.matmul %7, %1, %cst_10 {dimension_numbers = #tpu.dot_dimension_numbers<[1], [0], [0], [1], [0, 0, 1, 1], [], []>} : vector<10x6xf32>, vector<6x12xf32>, vector<10x12xf32> -> vector<10x12xf32>
      %9 = arith.index_cast %arg9 : i32 to index
      %c0_11 = arith.constant 0 : index
      %c0_12 = arith.constant 0 : index
      %10 = vector.load %arg8[%9, %c0_11, %c0_12] : memref<4x10x12xf32, #tpu.memory_space<vmem>>, vector<1x10x12xf32>
      %11 = vector.shape_cast %10 : vector<1x10x12xf32> to vector<10x12xf32>
      %12 = vector.shape_cast %8 : vector<10x12xf32> to vector<1x10x12xf32>
      tpu.vector_store %arg8[%9, %c0_11, %c0_12], %12 {strides = array<i32>} : memref<4x10x12xf32, #tpu.memory_space<vmem>>, vector<1x10x12xf32>,
    }
    %c4_i32_3 = arith.constant 4 : i32
    %c0_i32_4 = arith.constant 0 : i32
    %c8_i32 = arith.constant 8 : i32
    %3 = arith.addi %c0_i32_4, %c8_i32 : i32
    %c1_i32_5 = arith.constant 1 : i32
    scf.for %arg9 = %c0_i32_4 to %3 step %c1_i32_5  : i32 {
      %4 = arith.index_cast %arg9 : i32 to index
      %5 = memref.load %arg1[%4] : memref<8xi32, #tpu.memory_space<smem>>
      %6 = arith.index_cast %arg9 : i32 to index
      %7 = memref.load %arg2[%6] : memref<8xi32, #tpu.memory_space<smem>>
      %8 = arith.index_cast %arg9 : i32 to index
      %9 = memref.load %arg3[%8] : memref<8xf32, #tpu.memory_space<smem>>
      %cst = arith.constant 1.000000e+00 : f32
      %10 = arith.subf %cst, %9 : f32
      %11 = arith.index_cast %5 : i32 to index
      %c0_7 = arith.constant 0 : index
      %c0_8 = arith.constant 0 : index
      %12 = vector.load %arg8[%11, %c0_7, %c0_8] : memref<4x10x12xf32, #tpu.memory_space<vmem>>, vector<1x10x12xf32>
      %13 = vector.shape_cast %12 : vector<1x10x12xf32> to vector<10x12xf32>
      %14 = vector.broadcast %10 : f32 to vector<10x12xf32>
      %15 = arith.mulf %14, %13 : vector<10x12xf32>
      %16 = arith.index_cast %7 : i32 to index
      %c0_9 = arith.constant 0 : index
      %c0_10 = arith.constant 0 : index
      %17 = vector.load %arg8[%16, %c0_9, %c0_10] : memref<4x10x12xf32, #tpu.memory_space<vmem>>, vector<1x10x12xf32>
      %18 = vector.shape_cast %17 : vector<1x10x12xf32> to vector<10x12xf32>
      %19 = vector.broadcast %9 : f32 to vector<10x12xf32>
      %20 = arith.mulf %19, %18 : vector<10x12xf32>
      %21 = arith.addf %15, %20 : vector<10x12xf32>
      %c0_11 = arith.constant 0 : index
      %22 = arith.index_cast %arg9 : i32 to index
      %c0_12 = arith.constant 0 : index
      %c0_13 = arith.constant 0 : index
      %23 = vector.load %arg7[%c0_11, %22, %c0_12, %c0_13] : memref<1x8x10x12xf32, #tpu.memory_space<vmem>>, vector<1x1x10x12xf32>
      %24 = vector.shape_cast %23 : vector<1x1x10x12xf32> to vector<10x12xf32>
      %25 = vector.shape_cast %21 : vector<10x12xf32> to vector<1x1x10x12xf32>
      tpu.vector_store %arg7[%c0_11, %22, %c0_12, %c0_13], %25 {strides = array<i32>} : memref<1x8x10x12xf32, #tpu.memory_space<vmem>>, vector<1x1x10x12xf32>,
    }
    %c8_i32_6 = arith.constant 8 : i32
    return
  }
  func.func @transform_0(%arg0: i32) -> i32 {
    %c0_i32 = arith.constant 0 : i32
    %c0_i32_0 = arith.constant 0 : i32
    return %c0_i32 : i32
  }
  func.func @transform_1(%arg0: i32) -> i32 {
    %c0_i32 = arith.constant 0 : i32
    %c0_i32_0 = arith.constant 0 : i32
    return %c0_i32 : i32
  }
  func.func @transform_2(%arg0: i32) -> i32 {
    %c0_i32 = arith.constant 0 : i32
    %c0_i32_0 = arith.constant 0 : i32
    return %c0_i32 : i32
  }
  func.func @transform_3(%arg0: i32) -> (i32, i32) {
    %c0_i32 = arith.constant 0 : i32
    %c0_i32_0 = arith.constant 0 : i32
    %c0_i32_1 = arith.constant 0 : i32
    return %c0_i32, %c0_i32_0 : i32, i32
  }
  func.func @transform_4(%arg0: i32) -> (i32, i32) {
    %c0_i32 = arith.constant 0 : i32
    %c0_i32_0 = arith.constant 0 : i32
    %c0_i32_1 = arith.constant 0 : i32
    return %c0_i32, %c0_i32_0 : i32, i32
  }
  func.func @transform_5(%arg0: i32) -> (i32, i32, i32, i32) {
    %c0_i32 = arith.constant 0 : i32
    %c0_i32_0 = arith.constant 0 : i32
    %c0_i32_1 = arith.constant 0 : i32
    %c0_i32_2 = arith.constant 0 : i32
    return %arg0, %c0_i32, %c0_i32_0, %c0_i32_1 : i32, i32, i32, i32
  }
  func.func @transform_6(%arg0: i32) -> (i32, i32, i32, i32) {
    %c0_i32 = arith.constant 0 : i32
    %c0_i32_0 = arith.constant 0 : i32
    %c0_i32_1 = arith.constant 0 : i32
    %c0_i32_2 = arith.constant 0 : i32
    return %arg0, %c0_i32, %c0_i32_0, %c0_i32_1 : i32, i32, i32, i32
  }
}

</mosaic_0001>

<llo_original>
// kernel: tpu_custom_call.1
$region0: #{tpu_custom_call.1}
  #allocation0 [shape = 'u32[]', space=smem, size = 0x4, offset = 0x4, fixed_abs, tag = 'smem constant byte address 0x4 - core index']
  #allocation1 [shape = 'u32[144,128]{1,0:T(1,128)}', space=vmem, size = 0x12000, scoped, tag = 'internal scratch']
  #allocation2 [shape = 'f32[4,10,12]{2,1,0:T(8,128)}', space=vmem, size = 0x8000, scoped, tag = 'scratch operand']
  %s0 = inlined_call_operand.vmem [shape: s32[8], index: 0, kind: input, shape index: {}]
  %s1 = inlined_call_operand.vmem [shape: s32[8], index: 1, kind: input, shape index: {}]
  %s2 = inlined_call_operand.vmem [shape: f32[8], index: 2, kind: input, shape index: {}]
  %s3 = inlined_call_operand.vmem [shape: f32[10,5], index: 3, kind: input, shape index: {}]
  %s4 = inlined_call_operand.vmem [shape: f32[6,12], index: 4, kind: input, shape index: {}]
  %s5 = inlined_call_operand.vmem [shape: f32[6,4,5,6], index: 5, kind: input, shape index: {}]
  %s6 = inlined_call_operand.vmem [shape: f32[6,8,10,12], index: 6, kind: output, shape index: {}]
  %s7 = sld [smem:[#allocation0]]
  $region83: #{tpu_custom_call.1} parent=0
    _
  %s9 = ssub.s32 1, %s7
  %s10 = scalar_select 0, %s9, %s7
  $region1: #{tpu_custom_call.1} parent=0
    #allocation3 [shape = 'u8[512]{0}', space=smem, size = 0x200, scoped, tag = 'input window, operand 0, single buffered']
    #allocation4 [shape = 's32[2]{0}', space=sflag, size = 0x8, scoped, tag = 'scoped memory for tpu_custom_call.1']
    #allocation5 [shape = 'u8[512]{0}', space=smem, size = 0x200, scoped, tag = 'input window, operand 1, single buffered']
    #allocation6 [shape = 's32[1]{0}', space=sflag, size = 0x4, scoped, tag = 'scoped memory for tpu_custom_call.1']
    #allocation7 [shape = 'u8[512]{0}', space=smem, size = 0x200, scoped, tag = 'input window, operand 2, single buffered']
    %11 = vsyncpa [#allocation4], 0
    %12 = vsyncpa [#allocation6], 0
    loop: start=0, step=1, limit=8
    $region2: #{tpu_custom_call.1} parent=1 // loop_pre_header
      _
    $region3: #{tpu_custom_call.1} parent=1 // loop_header
      %s14 = sphi 0, %s18
      %p15 = scmp.ge.s32.totalorder %s14, 8
      %s22 = sphi 0, %s22
      %s24 = sphi 0, %s22
      %s25 = sphi 0, %s24
      %s39 = sphi 0, %s25
      %s43 = sphi 0, %s43
      %s45 = sphi 0, %s43
      %s46 = sphi 0, %s45
      %s60 = sphi 0, %s46
      %s64 = sphi 0, %s64
      %s66 = sphi 0, %s64
      %s67 = sphi 0, %s66
      %s81 = sphi 0, %s67
      %s85 = sphi 0, %s85
      %s87 = sphi 0, %s85
      %s88 = sphi 0, %s87
      %s102 = sphi 0, %s88
      %s106 = sphi 0, %s106
      %s108 = sphi 0, %s106
      %s109 = sphi 0, %s108
      %s123 = sphi 0, %s109
      %s129 = sphi 0, %s131
      %s132 = sphi 0, %s129
      %s133 = sphi 0, %s132
      %s149 = sphi 0, %s133
      %s155 = sphi 0, %s157
      %s158 = sphi 0, %s155
      %s159 = sphi 0, %s158
      %s175 = sphi 0, %s159
    $region4: #{tpu_custom_call.1} parent=1 // loop_header_branch
      %17 = sbr.rel (%p15) target = $region8
    $region5: #{tpu_custom_call.1} parent=1 // loop_body
      %s19 = ssub.s32 %s14, 1
      %s20 = ssub.s32 %s14, 2
      %s21 = sadd.s32 %s14, 1
      %s23 = sadd.s32 %s22, 1
      %p26 = scmp.eq.s32.totalorder %s14, 5
      %p27 = scmp.ne.s32.totalorder %s22, %s24
      %p28 = scmp.eq.s32.totalorder %s14, 0
      %p29 = por %p27, %p28
      %p30 = scmp.ne.s32.totalorder %s22, %s24
      %p31 = scmp.eq.s32.totalorder %s19, 5
      %p32 = por %p30, %p31
      %p33 = scmp.ne.s32.totalorder %s24, %s25
      %p34 = scmp.eq.s32.totalorder %s19, 0
      %p35 = por %p33, %p34
      %p36 = scmp.ne.s32.totalorder %s24, %s25
      %p37 = scmp.eq.s32.totalorder %s20, 5
      %p38 = por %p36, %p37
      %p40 = scmp.ne.s32.totalorder %s25, %s39
      %p41 = scmp.eq.s32.totalorder %s20, 0
      %p42 = por %p40, %p41
      %s44 = sadd.s32 %s43, 1
      %p47 = scmp.eq.s32.totalorder %s14, 5
      %p48 = scmp.ne.s32.totalorder %s43, %s45
      %p49 = scmp.eq.s32.totalorder %s14, 0
      %p50 = por %p48, %p49
      %p51 = scmp.ne.s32.totalorder %s43, %s45
      %p52 = scmp.eq.s32.totalorder %s19, 5
      %p53 = por %p51, %p52
      %p54 = scmp.ne.s32.totalorder %s45, %s46
      %p55 = scmp.eq.s32.totalorder %s19, 0
      %p56 = por %p54, %p55
      %p57 = scmp.ne.s32.totalorder %s45, %s46
      %p58 = scmp.eq.s32.totalorder %s20, 5
      %p59 = por %p57, %p58
      %p61 = scmp.ne.s32.totalorder %s46, %s60
      %p62 = scmp.eq.s32.totalorder %s20, 0
      %p63 = por %p61, %p62
      %s65 = sadd.s32 %s64, 1
      %p68 = scmp.eq.s32.totalorder %s14, 5
      %p69 = scmp.ne.s32.totalorder %s64, %s66
      %p70 = scmp.eq.s32.totalorder %s14, 0
      %p71 = por %p69, %p70
      %p72 = scmp.ne.s32.totalorder %s64, %s66
      %p73 = scmp.eq.s32.totalorder %s19, 5
      %p74 = por %p72, %p73
      %p75 = scmp.ne.s32.totalorder %s66, %s67
      %p76 = scmp.eq.s32.totalorder %s19, 0
      %p77 = por %p75, %p76
      %p78 = scmp.ne.s32.totalorder %s66, %s67
      %p79 = scmp.eq.s32.totalorder %s20, 5
      %p80 = por %p78, %p79
      %p82 = scmp.ne.s32.totalorder %s67, %s81
      %p83 = scmp.eq.s32.totalorder %s20, 0
      %p84 = por %p82, %p83
      %s86 = sadd.s32 %s85, 1
      %p89 = scmp.eq.s32.totalorder %s14, 5
      %p90 = scmp.ne.s32.totalorder %s85, %s87
      %p91 = scmp.eq.s32.totalorder %s14, 0
      %p92 = por %p90, %p91
      %p93 = scmp.ne.s32.totalorder %s85, %s87
      %p94 = scmp.eq.s32.totalorder %s19, 5
      %p95 = por %p93, %p94
      %p96 = scmp.ne.s32.totalorder %s87, %s88
      %p97 = scmp.eq.s32.totalorder %s19, 0
      %p98 = por %p96, %p97
      %p99 = scmp.ne.s32.totalorder %s87, %s88
      %p100 = scmp.eq.s32.totalorder %s20, 5
      %p101 = por %p99, %p100
      %p103 = scmp.ne.s32.totalorder %s88, %s102
      %p104 = scmp.eq.s32.totalorder %s20, 0
      %p105 = por %p103, %p104
      %s107 = sadd.s32 %s106, 1
      %p110 = scmp.eq.s32.totalorder %s14, 5
      %p111 = scmp.ne.s32.totalorder %s106, %s108
      %p112 = scmp.eq.s32.totalorder %s14, 0
      %p113 = por %p111, %p112
      %p114 = scmp.ne.s32.totalorder %s106, %s108
      %p115 = scmp.eq.s32.totalorder %s19, 5
      %p116 = por %p114, %p115
      %p117 = scmp.ne.s32.totalorder %s108, %s109
      %p118 = scmp.eq.s32.totalorder %s19, 0
      %p119 = por %p117, %p118
      %p120 = scmp.ne.s32.totalorder %s108, %s109
      %p121 = scmp.eq.s32.totalorder %s20, 5
      %p122 = por %p120, %p121
      %p124 = scmp.ne.s32.totalorder %s109, %s123
      %p125 = scmp.eq.s32.totalorder %s20, 0
      %p126 = por %p124, %p125
      %s127 = ssub.s32 %s14, %s21
      %p128 = scmp.eq.s32.totalorder %s127, 0
      %s130 = sadd.s32 %s129, 1
      %s131 = scalar_select %p128, %s129, %s130
      %p134 = pneg %p128
      %p135 = scmp.eq.s32.totalorder %s14, 5
      %p136 = por %p134, %p135
      %p137 = scmp.ne.s32.totalorder %s129, %s132
      %p138 = scmp.eq.s32.totalorder %s14, 0
      %p139 = por %p137, %p138
      %p140 = scmp.ne.s32.totalorder %s129, %s132
      %p141 = scmp.eq.s32.totalorder %s19, 5
      %p142 = por %p140, %p141
      %p143 = scmp.ne.s32.totalorder %s132, %s133
      %p144 = scmp.eq.s32.totalorder %s19, 0
      %p145 = por %p143, %p144
      %p146 = scmp.ne.s32.totalorder %s132, %s133
      %p147 = scmp.eq.s32.totalorder %s20, 5
      %p148 = por %p146, %p147
      %p150 = scmp.ne.s32.totalorder %s133, %s149
      %p151 = scmp.eq.s32.totalorder %s20, 0
      %p152 = por %p150, %p151
      %s153 = ssub.s32 %s14, %s21
      %p154 = scmp.eq.s32.totalorder %s153, 0
      %s156 = sadd.s32 %s155, 1
      %s157 = scalar_select %p154, %s155, %s156
      %p160 = pneg %p154
      %p161 = scmp.eq.s32.totalorder %s14, 5
      %p162 = por %p160, %p161
      %p163 = scmp.ne.s32.totalorder %s155, %s158
      %p164 = scmp.eq.s32.totalorder %s14, 0
      %p165 = por %p163, %p164
      %p166 = scmp.ne.s32.totalorder %s155, %s158
      %p167 = scmp.eq.s32.totalorder %s19, 5
      %p168 = por %p166, %p167
      %p169 = scmp.ne.s32.totalorder %s158, %s159
      %p170 = scmp.eq.s32.totalorder %s19, 0
      %p171 = por %p169, %p170
      %p172 = scmp.ne.s32.totalorder %s158, %s159
      %p173 = scmp.eq.s32.totalorder %s20, 5
      %p174 = por %p172, %p173
      %p176 = scmp.ne.s32.totalorder %s159, %s175
      %p177 = scmp.eq.s32.totalorder %s20, 0
      %p178 = por %p176, %p177
      %p179 = scmp.le.s32.totalorder 1, %s14
      %p180 = scmp.lt.s32.totalorder %s14, 7
      %p181 = pnand %p179, %p180
      %p182 = pneg %p181
      // Predicated region
      $region9: #{tpu_custom_call.1} parent=5 // pred_check
        _
      $region10: #{tpu_custom_call.1} parent=5 // pred_check_branch
        %184 = sbr.rel (%p181) target = $region12
      $region11: #{tpu_custom_call.1} parent=5 // pred_region
        %s185 = ssub.s32 %s14, 1
        // Predicated region
        $region13: #{tpu_custom_call.1} parent=11 // pred_check
          %p186 = pneg %p35
        $region14: #{tpu_custom_call.1} parent=11 // pred_check_branch
          %188 = sbr.rel (%p186) target = $region16
        $region15: #{tpu_custom_call.1} parent=11 // pred_region
          %s190 = ssub.s32 16, 16
          %191 = vsyncadd [#allocation4], %s190
          %s193 = sshll.u32 %s0, 4
          %s194 = int_to_ptr.vmem [resolvable:$true] %s193
          %196 = dma.vmem_to_smem %s194, 16, [#allocation3], [#allocation4]
        $region16: #{tpu_custom_call.1} parent=11 // pred_fallthru
          _
        // Predicated region
        $region17: #{tpu_custom_call.1} parent=11 // pred_check
          %p197 = pneg %p56
        $region18: #{tpu_custom_call.1} parent=11 // pred_check_branch
          %199 = sbr.rel (%p197) target = $region20
        $region19: #{tpu_custom_call.1} parent=11 // pred_region
          %s201 = ssub.s32 16, 16
          %202 = vsyncadd [#allocation6], %s201
          %s204 = sshll.u32 %s1, 4
          %s205 = int_to_ptr.vmem [resolvable:$true] %s204
          %207 = dma.vmem_to_smem %s205, 16, [#allocation5], [#allocation6]
        $region20: #{tpu_custom_call.1} parent=11 // pred_fallthru
          _
        // Predicated region
        $region21: #{tpu_custom_call.1} parent=11 // pred_check
          %p208 = pneg %p77
        $region22: #{tpu_custom_call.1} parent=11 // pred_check_branch
          %210 = sbr.rel (%p208) target = $region24
        $region23: #{tpu_custom_call.1} parent=11 // pred_region
          %s212 = ssub.s32 16, 16
          %213 = vsyncadd [#allocation6], %s212
          %s215 = sshll.u32 %s2, 4
          %s216 = int_to_ptr.vmem [resolvable:$true] %s215
          %218 = dma.vmem_to_smem %s216, 16, [#allocation7], [#allocation6]
        $region24: #{tpu_custom_call.1} parent=11 // pred_fallthru
          _
        // Predicated region
        $region25: #{tpu_custom_call.1} parent=11 // pred_check
          %p219 = pneg %p98
        $region26: #{tpu_custom_call.1} parent=11 // pred_check_branch
          %221 = sbr.rel (%p219) target = $region28
        $region27: #{tpu_custom_call.1} parent=11 // pred_region
          _
        $region28: #{tpu_custom_call.1} parent=11 // pred_fallthru
          _
        // Predicated region
        $region29: #{tpu_custom_call.1} parent=11 // pred_check
          %p222 = pneg %p119
        $region30: #{tpu_custom_call.1} parent=11 // pred_check_branch
          %224 = sbr.rel (%p222) target = $region32
        $region31: #{tpu_custom_call.1} parent=11 // pred_region
          _
        $region32: #{tpu_custom_call.1} parent=11 // pred_fallthru
          _
      $region12: #{tpu_custom_call.1} parent=5 // pred_fallthru
        _
      %p225 = scmp.lt.s32.totalorder %s14, 6
      // Predicated region
      $region33: #{tpu_custom_call.1} parent=5 // pred_check
        %p226 = pneg %p225
      $region34: #{tpu_custom_call.1} parent=5 // pred_check_branch
        %228 = sbr.rel (%p226) target = $region36
      $region35: #{tpu_custom_call.1} parent=5 // pred_region
        // Predicated region
        $region37: #{tpu_custom_call.1} parent=35 // pred_check
          %p229 = pneg %p139
        $region38: #{tpu_custom_call.1} parent=35 // pred_check_branch
          %231 = sbr.rel (%p229) target = $region40
        $region39: #{tpu_custom_call.1} parent=35 // pred_region
          %p232 = scmp.lt.s32.totalorder %s14, 5
          %s233 = scalar_select %p232, %s14, 5
          %s234 = smul.addr %s233, 4
          %s235 = smul.addr %s234, 8
          %s236 = scalar_lea.vmem %s5, %s235
        $region40: #{tpu_custom_call.1} parent=35 // pred_fallthru
          _
      $region36: #{tpu_custom_call.1} parent=5 // pred_fallthru
        _
      %p237 = scmp.le.s32.totalorder 1, %s14
      %p238 = scmp.lt.s32.totalorder %s14, 7
      %p239 = pnand %p237, %p238
      %p240 = pneg %p239
      // Predicated region
      $region41: #{tpu_custom_call.1} parent=5 // pred_check
        _
      $region42: #{tpu_custom_call.1} parent=5 // pred_check_branch
        %242 = sbr.rel (%p239) target = $region44
      $region43: #{tpu_custom_call.1} parent=5 // pred_region
        %s243 = ssub.s32 %s14, 1
        // Predicated region
        $region45: #{tpu_custom_call.1} parent=43 // pred_check
          %p244 = pneg %p35
        $region46: #{tpu_custom_call.1} parent=43 // pred_check_branch
          %246 = sbr.rel (%p244) target = $region48
        $region47: #{tpu_custom_call.1} parent=43 // pred_region
          %247 = dma.done [#allocation4], 16
        $region48: #{tpu_custom_call.1} parent=43 // pred_fallthru
          _
        // Predicated region
        $region49: #{tpu_custom_call.1} parent=43 // pred_check
          %p248 = pneg %p56
        $region50: #{tpu_custom_call.1} parent=43 // pred_check_branch
          %250 = sbr.rel (%p248) target = $region52
        $region51: #{tpu_custom_call.1} parent=43 // pred_region
          %251 = dma.done [#allocation6], 16
        $region52: #{tpu_custom_call.1} parent=43 // pred_fallthru
          _
        // Predicated region
        $region53: #{tpu_custom_call.1} parent=43 // pred_check
          %p252 = pneg %p77
        $region54: #{tpu_custom_call.1} parent=43 // pred_check_branch
          %254 = sbr.rel (%p252) target = $region56
        $region55: #{tpu_custom_call.1} parent=43 // pred_region
          %255 = dma.done [#allocation6], 16
        $region56: #{tpu_custom_call.1} parent=43 // pred_fallthru
          _
        %256 = sfence
        %p257 = pneg %p35
        %p258 = pneg %p32
        %p259 = pneg %p56
        %p260 = pneg %p53
        %p261 = pneg %p77
        %p262 = pneg %p74
        %p263 = pneg %p98
        %p264 = pneg %p95
        %p265 = pneg %p119
        %p266 = pneg %p116
        %p267 = scmp.lt.s32.totalorder %s19, 5
        %s268 = scalar_select %p267, %s19, 5
        %s269 = smul.addr %s268, 4
        %s270 = smul.addr %s269, 8
        %s271 = scalar_lea.vmem %s5, %s270
        %p272 = pneg %p145
        %p273 = pneg %p142
        %p274 = pneg %p171
        %p275 = pneg %p168
        %p276 = scmp.lt.s32.totalorder %s19, 5
        %s277 = scalar_select %p276, %s19, 5
        %s278 = smul.addr %s277, 16
        %s279 = smul.addr %s278, 8
        %s280 = scalar_lea.vmem %s6, %s279
        %p281 = scmp.lt.s32.totalorder %s19, 5
        %s282 = scalar_select %p281, %s19, 5
        %s283 = smul.addr %s282, 4
        %s284 = smul.addr %s283, 8
        %s285 = scalar_lea.vmem %s5, %s284
        %p286 = scmp.lt.s32.totalorder %s19, 5
        %s287 = scalar_select %p286, %s19, 5
        %s288 = smul.addr %s287, 16
        %s289 = smul.addr %s288, 8
        %s290 = scalar_lea.vmem %s6, %s289
        %v291 = vld [vmem:[%s3] sm:$0xff]
        %v292 = vld [vmem:[%s3 + $0x8] sm:$0x3]
        %v293 = vld [vmem:[%s4] sm:$0x3f]
        loop: start=0, step=1, limit=4
        $region57: #{tpu_custom_call.1} parent=43 // loop_pre_header
          _
        $region58: #{tpu_custom_call.1} parent=43 // loop_header
          %s295 = sphi 0, %s299
          %p296 = scmp.ge.s32.totalorder %s295, 4
        $region59: #{tpu_custom_call.1} parent=43 // loop_header_branch
          %298 = sbr.rel (%p296) target = $region63
        $region60: #{tpu_custom_call.1} parent=43 // loop_body
          %s300 = smul.u32 %s295, 8
          %s301 = scalar_lea.vmem %s285, %s300
          %v302 = vld [vmem:[%s301] sm:$0x1f]
          %vm303 = vcmask 39936
          %v305 = vsel %vm303, %v291, 0
          %v308 = vsel %vm303, %v292, 0
          %vm310 = vcmask 1044480
          %v312 = vsel %vm310, %v302, 0
          %314 = vmatprep.subr.mxu0 0.0
          %315 = vmatpush1.msra.mxu0 0.0
          %316 = vmatprep.subr.mxu0 0.0
          %317 = vmatpush1.msra.mxu0 0.0
          %318 = vmatprep.subr.mxu0 0.0
          %319 = vmatpush1.msra.mxu0 0.0
          %320 = vmatprep.subr.mxu0 0.0
          %321 = vmatpush1.msra.mxu0 0.0
          %322 = vmatprep.subr.mxu0 0.0
          %323 = vmatpush1.msra.mxu0 0.0
          %324 = vmatprep.subr.mxu0 0.0
          %325 = vmatpush1.msra.mxu0 0.0
          %326 = vmatprep.subr.mxu0 0.0
          %327 = vmatpush1.msra.mxu0 0.0
          %328 = vmatprep.subr.mxu0 0.0
          %329 = vmatpush1.msra.mxu0 0.0
          %330 = vmatprep.subr.mxu0 0.0
          %331 = vmatpush1.msra.mxu0 0.0
          %332 = vmatprep.subr.mxu0 0.0
          %333 = vmatpush1.msra.mxu0 0.0
          %334 = vmatprep.subr.mxu0 0.0
          %335 = vmatpush1.msra.mxu0 0.0
          %336 = vmatprep.subr.mxu0 0.0
          %337 = vmatpush1.msra.mxu0 0.0
          %338 = vmatprep.subr.mxu0 0.0
          %339 = vmatpush1.msra.mxu0 0.0
          %340 = vmatprep.subr.mxu0 0.0
          %341 = vmatpush1.msra.mxu0 0.0
          %342 = vmatprep.subr.mxu0 0.0
          %343 = vmatpush1.msra.mxu0 0.0
          %344 = vmatprep.subr.mxu0 0.0
          %345 = vmatpush1.msra.mxu0 %v312
          %346 = vmatprep.subr.mxu0 0.0
          %347 = vmatpush2.msra.mxu0 0.0
          %348 = vmatprep.subr.mxu0 0.0
          %349 = vmatpush2.msra.mxu0 0.0
          %350 = vmatprep.subr.mxu0 0.0
          %351 = vmatpush2.msra.mxu0 0.0
          %352 = vmatprep.subr.mxu0 0.0
          %353 = vmatpush2.msra.mxu0 0.0
          %354 = vmatprep.subr.mxu0 0.0
          %355 = vmatpush2.msra.mxu0 0.0
          %356 = vmatprep.subr.mxu0 0.0
          %357 = vmatpush2.msra.mxu0 0.0
          %358 = vmatprep.subr.mxu0 0.0
          %359 = vmatpush2.msra.mxu0 0.0
          %360 = vmatprep.subr.mxu0 0.0
          %361 = vmatpush2.msra.mxu0 0.0
          %362 = vmatprep.subr.mxu0 0.0
          %363 = vmatpush2.msra.mxu0 0.0
          %364 = vmatprep.subr.mxu0 0.0
          %365 = vmatpush2.msra.mxu0 0.0
          %366 = vmatprep.subr.mxu0 0.0
          %367 = vmatpush2.msra.mxu0 0.0
          %368 = vmatprep.subr.mxu0 0.0
          %369 = vmatpush2.msra.mxu0 0.0
          %370 = vmatprep.subr.mxu0 0.0
          %371 = vmatpush2.msra.mxu0 0.0
          %372 = vmatprep.subr.mxu0 0.0
          %373 = vmatpush2.msra.mxu0 0.0
          %374 = vmatprep.subr.mxu0 0.0
          %375 = vmatpush2.msra.mxu0 0.0
          %376 = vmatprep.subr.mxu0 0.0
          %377 = vmatpush2.msra.mxu0 0.0
          %378 = vmatprep.mubr.f32.mxu0 0.0
          %379 = vmatmul.mubr.f32.gmra.mxu0 %v305
          %v380 = vpop.f32.mrf.mxu0
          %v381 = vadd.f32 0.0, %v380
          %v382 = vpop.f32.mrf.mxu0
          %383 = vmatprep.mubr.f32.mxu0 0.0
          %384 = vmatmul.mubr.f32.gmra.mxu0 %v308
          %v385 = vpop.f32.mrf.mxu0
          %v386 = vadd.f32 0.0, %v385
          %v387 = vpop.f32.mrf.mxu0
          %388 = vdwg.mxu0
          %vm389 = vcmask 48128
          %v391 = vsel %vm389, %v381, 0
          %v394 = vsel %vm389, %v386, 0
          %vm396 = vcmask 1045504
          %v398 = vsel %vm396, %v293, 0
          %400 = vmatprep.subr.mxu0 0.0
          %401 = vmatpush1.msra.mxu0 0.0
          %402 = vmatprep.subr.mxu0 0.0
          %403 = vmatpush1.msra.mxu0 0.0
          %404 = vmatprep.subr.mxu0 0.0
          %405 = vmatpush1.msra.mxu0 0.0
          %406 = vmatprep.subr.mxu0 0.0
          %407 = vmatpush1.msra.mxu0 0.0
          %408 = vmatprep.subr.mxu0 0.0
          %409 = vmatpush1.msra.mxu0 0.0
          %410 = vmatprep.subr.mxu0 0.0
          %411 = vmatpush1.msra.mxu0 0.0
          %412 = vmatprep.subr.mxu0 0.0
          %413 = vmatpush1.msra.mxu0 0.0
          %414 = vmatprep.subr.mxu0 0.0
          %415 = vmatpush1.msra.mxu0 0.0
          %416 = vmatprep.subr.mxu0 0.0
          %417 = vmatpush1.msra.mxu0 0.0
          %418 = vmatprep.subr.mxu0 0.0
          %419 = vmatpush1.msra.mxu0 0.0
          %420 = vmatprep.subr.mxu0 0.0
          %421 = vmatpush1.msra.mxu0 0.0
          %422 = vmatprep.subr.mxu0 0.0
          %423 = vmatpush1.msra.mxu0 0.0
          %424 = vmatprep.subr.mxu0 0.0
          %425 = vmatpush1.msra.mxu0 0.0
          %426 = vmatprep.subr.mxu0 0.0
          %427 = vmatpush1.msra.mxu0 0.0
          %428 = vmatprep.subr.mxu0 0.0
          %429 = vmatpush1.msra.mxu0 0.0
          %430 = vmatprep.subr.mxu0 0.0
          %431 = vmatpush1.msra.mxu0 %v398
          %432 = vmatprep.subr.mxu0 0.0
          %433 = vmatpush2.msra.mxu0 0.0
          %434 = vmatprep.subr.mxu0 0.0
          %435 = vmatpush2.msra.mxu0 0.0
          %436 = vmatprep.subr.mxu0 0.0
          %437 = vmatpush2.msra.mxu0 0.0
          %438 = vmatprep.subr.mxu0 0.0
          %439 = vmatpush2.msra.mxu0 0.0
          %440 = vmatprep.subr.mxu0 0.0
          %441 = vmatpush2.msra.mxu0 0.0
          %442 = vmatprep.subr.mxu0 0.0
          %443 = vmatpush2.msra.mxu0 0.0
          %444 = vmatprep.subr.mxu0 0.0
          %445 = vmatpush2.msra.mxu0 0.0
          %446 = vmatprep.subr.mxu0 0.0
          %447 = vmatpush2.msra.mxu0 0.0
          %448 = vmatprep.subr.mxu0 0.0
          %449 = vmatpush2.msra.mxu0 0.0
          %450 = vmatprep.subr.mxu0 0.0
          %451 = vmatpush2.msra.mxu0 0.0
          %452 = vmatprep.subr.mxu0 0.0
          %453 = vmatpush2.msra.mxu0 0.0
          %454 = vmatprep.subr.mxu0 0.0
          %455 = vmatpush2.msra.mxu0 0.0
          %456 = vmatprep.subr.mxu0 0.0
          %457 = vmatpush2.msra.mxu0 0.0
          %458 = vmatprep.subr.mxu0 0.0
          %459 = vmatpush2.msra.mxu0 0.0
          %460 = vmatprep.subr.mxu0 0.0
          %461 = vmatpush2.msra.mxu0 0.0
          %462 = vmatprep.subr.mxu0 0.0
          %463 = vmatpush2.msra.mxu0 0.0
          %464 = vmatprep.mubr.f32.mxu0 0.0
          %465 = vmatmul.mubr.f32.gmra.mxu0 %v391
          %v466 = vpop.f32.mrf.mxu0
          %v467 = vadd.f32 0.0, %v466
          %v468 = vpop.f32.mrf.mxu0
          %469 = vmatprep.mubr.f32.mxu0 0.0
          %470 = vmatmul.mubr.f32.gmra.mxu0 %v394
          %v471 = vpop.f32.mrf.mxu0
          %v472 = vadd.f32 0.0, %v471
          %v473 = vpop.f32.mrf.mxu0
          %474 = vdwg.mxu0
          %s475 = smul.u32 %s295, 16
          %s476 = scalar_lea.vmem [#allocation2], %s475
          %vm477 = vcmask 97280
          %478 = vst.msk [vmem:[%s476] sm:$0xff] %vm477, %v467
          %vm479 = vcmask 91136
          %480 = vst.msk [vmem:[%s476 + $0x8] sm:$0x3] %vm479, %v472
        $region61: #{tpu_custom_call.1} parent=43 // loop_footer
          %s299 = sadd.s32 1, %s295
        $region62: #{tpu_custom_call.1} parent=43 // loop_footer_branch
          %294 = sbr.rel target = $region58
        $region63: #{tpu_custom_call.1} parent=43 // loop_exit
          _
        loop: start=0, step=1, limit=8
        $region64: #{tpu_custom_call.1} parent=43 // loop_pre_header
          _
        $region65: #{tpu_custom_call.1} parent=43 // loop_header
          %s482 = sphi 0, %s486
          %p483 = scmp.ge.s32.totalorder %s482, 8
        $region66: #{tpu_custom_call.1} parent=43 // loop_header_branch
          %485 = sbr.rel (%p483) target = $region70
        $region67: #{tpu_custom_call.1} parent=43 // loop_body
          %s487 = sld [smem:[#allocation3 + %s482]]
          %s488 = sld [smem:[#allocation5 + %s482]]
          %s489 = sld [smem:[#allocation7 + %s482]]
          %s490 = ssub.f32 1.0, %s489
          %s491 = smul.u32 %s487, 16
          %s492 = scalar_lea.vmem [#allocation2], %s491
          %v493 = vld [vmem:[%s492] sm:$0xff]
          %v494 = vld [vmem:[%s492 + $0x8] sm:$0x3]
          %v495 = vstv %s490
          %v496 = vmul.f32 %v495, %v493
          %v497 = vmul.f32 %v495, %v494
          %s498 = smul.u32 %s488, 16
          %s499 = scalar_lea.vmem [#allocation2], %s498
          %v500 = vld [vmem:[%s499] sm:$0xff]
          %v501 = vld [vmem:[%s499 + $0x8] sm:$0x3]
          %v502 = vstv %s489
          %v503 = vmul.f32 %v502, %v500
          %v504 = vmul.f32 %v502, %v501
          %v505 = vadd.f32 %v496, %v503
          %v506 = vadd.f32 %v497, %v504
          %s507 = smul.u32 %s482, 16
          %s508 = scalar_lea.vmem %s290, %s507
          %vm509 = vcmask 97280
          %510 = vst.msk [vmem:[%s508] sm:$0xff] %vm509, %v505
          %vm511 = vcmask 91136
          %512 = vst.msk [vmem:[%s508 + $0x8] sm:$0x3] %vm511, %v506
        $region68: #{tpu_custom_call.1} parent=43 // loop_footer
          %s486 = sadd.s32 1, %s482
        $region69: #{tpu_custom_call.1} parent=43 // loop_footer_branch
          %481 = sbr.rel target = $region65
        $region70: #{tpu_custom_call.1} parent=43 // loop_exit
          _
        %p513 = scmp.lt.s32.totalorder %s19, 5
        %s514 = scalar_select %p513, %s19, 5
        %s515 = smul.addr %s514, 16
        %s516 = smul.addr %s515, 8
        %s517 = scalar_lea.vmem %s6, %s516
        // Predicated region
        $region71: #{tpu_custom_call.1} parent=43 // pred_check
          %p518 = pneg %p168
        $region72: #{tpu_custom_call.1} parent=43 // pred_check_branch
          %520 = sbr.rel (%p518) target = $region74
        $region73: #{tpu_custom_call.1} parent=43 // pred_region
          _
        $region74: #{tpu_custom_call.1} parent=43 // pred_fallthru
          _
      $region44: #{tpu_custom_call.1} parent=5 // pred_fallthru
        _
      %p521 = scmp.le.s32.totalorder 2, %s14
      // Predicated region
      $region75: #{tpu_custom_call.1} parent=5 // pred_check
        %p522 = pneg %p521
      $region76: #{tpu_custom_call.1} parent=5 // pred_check_branch
        %524 = sbr.rel (%p522) target = $region78
      $region77: #{tpu_custom_call.1} parent=5 // pred_region
        %s525 = ssub.s32 %s14, 2
        // Predicated region
        $region79: #{tpu_custom_call.1} parent=77 // pred_check
          %p526 = pneg %p174
        $region80: #{tpu_custom_call.1} parent=77 // pred_check_branch
          %528 = sbr.rel (%p526) target = $region82
        $region81: #{tpu_custom_call.1} parent=77 // pred_region
          %p529 = scmp.lt.s32.totalorder %s20, 5
          %s530 = scalar_select %p529, %s20, 5
          %s531 = smul.addr %s530, 16
          %s532 = smul.addr %s531, 8
          %s533 = scalar_lea.vmem %s6, %s532
        $region82: #{tpu_custom_call.1} parent=77 // pred_fallthru
          _
      $region78: #{tpu_custom_call.1} parent=5 // pred_fallthru
        _
    $region6: #{tpu_custom_call.1} parent=1 // loop_footer
      %s18 = sadd.s32 1, %s14
    $region7: #{tpu_custom_call.1} parent=1 // loop_footer_branch
      %13 = sbr.rel target = $region3
    $region8: #{tpu_custom_call.1} parent=1 // loop_exit
      _
    %534 = vsyncpa [#allocation4], 1
    %s535 = scalar_lea.sflag [#allocation4], 1
    %536 = vsyncpa %s535, 1
    %537 = vsyncpa [#allocation6], 1

</llo_original>
